<compile_context>
chip_gen: v6e
topology: v6e:2x2x1
jax: 0.10.0
libtpu: 0.0.40
codegen_flags: <defaults>
</compile_context>

<pallas_src>
import functools

import jax
import jax.numpy as jnp
import numpy as np
from jax.experimental import pallas as pl
from jax.experimental.pallas import tpu as pltpu

EPS = 1e-5  # BatchNorm1d default epsilon.


def _round_up(x, m):
    return ((x + m - 1) // m) * m


# ---------------------------------------------------------------------------
# Shared in-kernel math.
# ---------------------------------------------------------------------------
def _linear1(z_ref, w1_ref):
    """Linear1 without bias (exact under train-mode BN mean subtraction)."""
    z = z_ref[...].astype(jnp.bfloat16)                       # tiny (B, Dp) cast
    return jnp.dot(z, w1_ref[...], preferred_element_type=jnp.float32)  # f32 acc


def _bn_relu_head(h, scale, shift, w2_ref, b2):
    """Folded BN affine (FMA) + ReLU + Linear2 + Sigmoid.  Elementwise math f32."""
    a = jnp.maximum(h * scale + shift, 0.0).astype(jnp.bfloat16)
    o = jnp.dot(a, w2_ref[...], preferred_element_type=jnp.float32) + b2
    return jax.nn.sigmoid(o)


# ---------------------------------------------------------------------------
# Small-batch kernel: one whole-batch block (exact centered-variance BN).
# ---------------------------------------------------------------------------
def _whole_batch_kernel(z_ref, w1_ref, w2_ref, bn_ref, out_ref, *, hp, p):
    h = _linear1(z_ref, w1_ref)                               # (B, Hp) f32

    # Train-mode BatchNorm1d: biased variance over the batch, centered two-pass
    # form (avoids E[x^2]-E[x]^2 cancellation noted in review).
    mean = jnp.mean(h, axis=0, keepdims=True)                 # (1, Hp)
    c = h - mean
    var = jnp.mean(c * c, axis=0, keepdims=True)              # (1, Hp)

    gamma = bn_ref[0:1, :hp]
    beta = bn_ref[1:2, :hp]
    b2 = bn_ref[2:3, :p]
    scale = gamma * jax.lax.rsqrt(var + EPS)
    shift = beta - mean * scale

    out_ref[...] = _bn_relu_head(h, scale, shift, w2_ref, b2).astype(out_ref.dtype)


# ---------------------------------------------------------------------------
# Large-batch kernel: grid = (2 phases, batch tiles).
#   phase 0: accumulate per-feature sum / sum-of-squares across batch tiles.
#   phase 1: finalize scale/shift once, then normalize + head per tile.
# Zero-padded batch rows contribute exactly 0 to the sums (Linear1 has no bias),
# and the mean/var divide by the true row count, so padding is statistics-exact.
# ---------------------------------------------------------------------------
def _tiled_kernel(z_ref, w1_ref, w2_ref, bn_ref, out_ref,
                  sum_ref, sumsq_ref, scale_ref, shift_ref, *, inv_n, hp, p):
    phase = pl.program_id(0)
    i = pl.program_id(1)

    @pl.when((phase == 0) & (i == 0))
    def _():
        sum_ref[...] = jnp.zeros_like(sum_ref)
        sumsq_ref[...] = jnp.zeros_like(sumsq_ref)

    h = _linear1(z_ref, w1_ref)                               # (TB, Hp) f32

    @pl.when(phase == 0)
    def _():
        sum_ref[...] += jnp.sum(h, axis=0, keepdims=True)
        sumsq_ref[...] += jnp.sum(h * h, axis=0, keepdims=True)

    @pl.when(phase == 1)
    def _():
        @pl.when(i == 0)
        def _():
            mean = sum_ref[...] * inv_n
            var = jnp.maximum(sumsq_ref[...] * inv_n - mean * mean, 0.0)
            gamma = bn_ref[0:1, :hp]
            beta = bn_ref[1:2, :hp]
            s = gamma * jax.lax.rsqrt(var + EPS)
            scale_ref[...] = s
            shift_ref[...] = beta - mean * s

        b2 = bn_ref[2:3, :p]
        out_ref[...] = _bn_relu_head(h, scale_ref[...], shift_ref[...],
                                     w2_ref, b2).astype(out_ref.dtype)


def _cost_estimate(b, dp, hp, p, w, z_reads):
    flops = 2 * b * (dp * hp + hp * p)
    transcendentals = b * p + hp                       # sigmoid + rsqrt
    bytes_accessed = (z_reads * b * dp * 4             # z (f32)
                      + dp * hp * 2 + hp * p * 2       # bf16 weights
                      + 3 * w * 4                      # packed gamma/beta/b2
                      + b * p * 4)                     # output
    return pl.CostEstimate(flops=flops, transcendentals=transcendentals,
                           bytes_accessed=bytes_accessed)


# ---------------------------------------------------------------------------
# Wrapper.
# ---------------------------------------------------------------------------
@functools.partial(jax.jit,
                   static_argnames=("img_shape", "whole_batch_rows_max", "tile_rows"))
def decoder_forward(z, w1, w2, bn, *, img_shape,
                    whole_batch_rows_max=2048, tile_rows=512):
    B, D = z.shape
    Dp, Hp = w1.shape
    P = w2.shape[1]
    W = bn.shape[1]
    assert int(np.prod(img_shape)) == P

    # Pad the latent only to the bf16 contraction tile (32), not 128 (1.6x, not 6.4x).
    z_p = jnp.pad(z, ((0, 0), (0, Dp - D))) if Dp != D else z

    if B <= whole_batch_rows_max:
        # Whole batch in one VMEM block: exact BN stats, minimum fixed cost.
        # Threshold sized against the 16 MiB default scoped VMEM on v5e.
        kernel = functools.partial(_whole_batch_kernel, hp=Hp, p=P)
        flat = pl.pallas_call(
            kernel,
            out_shape=jax.ShapeDtypeStruct((B, P), jnp.float32),
            in_specs=[pl.BlockSpec(memory_space=pltpu.VMEM)] * 4,
            out_specs=pl.BlockSpec(memory_space=pltpu.VMEM),
            cost_estimate=_cost_estimate(B, Dp, Hp, P, W, z_reads=1),
        )(z_p, w1, w2, bn)
        out = flat
    else:
        TB = int(tile_rows)                      # 256-512 keeps v6e/v7x MXU fed
        Bp = _round_up(B, TB)
        if Bp != B:
            z_p = jnp.pad(z_p, ((0, Bp - B), (0, 0)))   # zero rows: 0 in BN sums
        nt = Bp // TB
        kernel = functools.partial(_tiled_kernel, inv_n=1.0 / B, hp=Hp, p=P)
        flat = pl.pallas_call(
            kernel,
            out_shape=jax.ShapeDtypeStruct((Bp, P), jnp.float32),
            grid=(2, nt),
            in_specs=[
                pl.BlockSpec((TB, Dp), lambda s, i: (i, 0)),
                pl.BlockSpec((Dp, Hp), lambda s, i: (0, 0)),   # resident
                pl.BlockSpec((Hp, P), lambda s, i: (0, 0)),    # resident
                pl.BlockSpec((3, W), lambda s, i: (0, 0)),     # resident
            ],
            # Phase 0 parks the output on block 0 (never written there, never
            # evicted); phase 1 writes block i exactly once -> no revisits.
            out_specs=pl.BlockSpec((TB, P), lambda s, i: (s * i, 0)),
            scratch_shapes=[pltpu.VMEM((1, Hp), jnp.float32)] * 4,
            compiler_params=pltpu.CompilerParams(
                dimension_semantics=("arbitrary", "arbitrary")),
            cost_estimate=_cost_estimate(Bp, Dp, Hp, P, W, z_reads=2),
        )(z_p, w1, w2, bn)
        out = flat[:B]

    return out.reshape((B,) + tuple(img_shape))


# ---------------------------------------------------------------------------
# Parameters (PyTorch nn.Linear-style init), stored in the kernel's layout.
# ---------------------------------------------------------------------------
def init_decoder_params(key, input_dim, n_hidden, out_dim):
    """w1: (Dp, Hp) bf16, w2: (Hp, P) bf16, bn: (3, max(Hp, P)) f32 packed as
    [gamma; beta; b2].  Linear1's bias is not materialized (exact under
    train-mode BatchNorm only)."""
    k1, k2, k3 = jax.random.split(key, 3)
    Dp = _round_up(input_dim, 32)     # bf16 contraction tile for matmul 1
    Hp = _round_up(n_hidden, 16)      # bf16 contraction tile for matmul 2
    W = max(Hp, out_dim)

    bound1 = 1.0 / np.sqrt(input_dim)
    w1_core = jax.random.uniform(k1, (input_dim, n_hidden), jnp.float32, -bound1, bound1)
    w1 = (jnp.zeros((Dp, Hp), jnp.float32)
          .at[:input_dim, :n_hidden].set(w1_core).astype(jnp.bfloat16))

    bound2 = 1.0 / np.sqrt(n_hidden)
    w2_core = jax.random.uniform(k2, (n_hidden, out_dim), jnp.float32, -bound2, bound2)
    w2 = (jnp.zeros((Hp, out_dim), jnp.float32)
          .at[:n_hidden, :].set(w2_core).astype(jnp.bfloat16))

    b2_core = jax.random.uniform(k3, (out_dim,), jnp.float32, -bound2, bound2)
    bn = jnp.zeros((3, W), jnp.float32)
    bn = bn.at[0, :n_hidden].set(1.0)        # gamma = 1 (padded hidden cols stay 0)
    bn = bn.at[2, :out_dim].set(b2_core)     # beta (row 1) stays 0
    return w1, w2, bn


# ---------------------------------------------------------------------------
# Pure-JAX reference (f32 math, same stored weights) for correctness checks.
# ---------------------------------------------------------------------------
def _reference_forward(z, w1, w2, bn, *, img_shape):
    B, D = z.shape
    Dp, Hp = w1.shape
    P = w2.shape[1]
    zf = jnp.pad(z, ((0, 0), (0, Dp - D))) if Dp != D else z
    h = zf @ w1.astype(jnp.float32)
    mean = jnp.mean(h, axis=0, keepdims=True)
    var = jnp.mean((h - mean) ** 2, axis=0, keepdims=True)
    gamma, beta, b2 = bn[0:1, :Hp], bn[1:2, :Hp], bn[2:3, :P]
    hn = (h - mean) * jax.lax.rsqrt(var + EPS) * gamma + beta
    a = jnp.maximum(hn, 0.0)
    o = a @ w2.astype(jnp.float32) + b2
    return jax.nn.sigmoid(o).reshape((B,) + tuple(img_shape))


if __name__ == "__main__":
    # Shapes consistent with the module.
    img_shape = (1, 8, 8)          # (C, H, W)
    n_hidden = 32
    latent_dim = 16
    n_classes = 4
    use_label = True
    input_dim = latent_dim + n_classes if use_label else latent_dim
    out_dim = int(np.prod(img_shape))

    key = jax.random.PRNGKey(0)
    kz_small, kz_big, kp = jax.random.split(key, 3)
    params = init_decoder_params(kp, input_dim, n_hidden, out_dim)

    # 1) Small batch -> single whole-batch block (latency path).
    z = jax.random.normal(kz_small, (8, input_dim), jnp.float32)
    img = jax.block_until_ready(decoder_forward(z, *params, img_shape=img_shape))
    ref = _reference_forward(z, *params, img_shape=img_shape)
    assert img.shape == (8,) + img_shape
    assert bool(jnp.all(jnp.isfinite(img)))
    assert bool(jnp.all((img >= 0.0) & (img <= 1.0)))
    assert np.allclose(np.asarray(img), np.asarray(ref), atol=3e-2), "small-batch mismatch"

    # 2) Larger batch -> two-phase batch-tiled grid (thresholds forced low to
    #    exercise the multi-tile BN statistics path, incl. padded rows).
    z_big = jax.random.normal(kz_big, (160, input_dim), jnp.float32)
    img_big = jax.block_until_ready(
        decoder_forward(z_big, *params, img_shape=img_shape,
                        whole_batch_rows_max=0, tile_rows=64))
    ref_big = _reference_forward(z_big, *params, img_shape=img_shape)
    assert img_big.shape == (160,) + img_shape
    assert np.allclose(np.asarray(img_big), np.asarray(ref_big), atol=3e-2), "tiled-batch mismatch"

    print("KERNEL_OK")
</pallas_src>

<mosaic_0001>
module attributes {stable_mosaic.version = 11 : i64} {
  func.func @_whole_batch_kernel(%arg0: memref<8x32xf32, #tpu.memory_space<vmem>>, %arg1: memref<32x32xbf16, #tpu.memory_space<vmem>>, %arg2: memref<32x64xbf16, #tpu.memory_space<vmem>>, %arg3: memref<3x64xf32, #tpu.memory_space<vmem>>, %arg4: memref<8x64xf32, #tpu.memory_space<vmem>>) attributes {dimension_semantics = [], scalar_prefetch = 0 : i64, scratch_operands = 0 : i64, tpu.core_type = #tpu.core_type<tc>} {
    %c0 = arith.constant 0 : index
    %c0_0 = arith.constant 0 : index
    %0 = vector.load %arg0[%c0, %c0_0] : memref<8x32xf32, #tpu.memory_space<vmem>>, vector<8x32xf32>
    %1 = arith.truncf %0 : vector<8x32xf32> to vector<8x32xbf16>
    %c0_1 = arith.constant 0 : index
    %c0_2 = arith.constant 0 : index
    %2 = vector.load %arg1[%c0_1, %c0_2] : memref<32x32xbf16, #tpu.memory_space<vmem>>, vector<32x32xbf16>
    %cst = arith.constant dense<0.000000e+00> : vector<8x32xf32>
    %3 = tpu.matmul %1, %2, %cst {dimension_numbers = #tpu.dot_dimension_numbers<[1], [0], [0], [1], [0, 0, 1, 1], [], []>} : vector<8x32xbf16>, vector<32x32xbf16>, vector<8x32xf32> -> vector<8x32xf32>
    %cst_3 = arith.constant dense<0.000000e+00> : vector<32xf32>
    %4 = vector.multi_reduction <add>, %3, %cst_3 [0] : vector<8x32xf32> to vector<32xf32>
    %5 = vector.shape_cast %4 : vector<32xf32> to vector<1x32xf32>
    %cst_4 = arith.constant 8.000000e+00 : f32
    %6 = vector.broadcast %cst_4 : f32 to vector<1x32xf32>
    %7 = arith.divf %5, %6 : vector<1x32xf32>
    %8 = vector.broadcast %7 : vector<1x32xf32> to vector<8x32xf32>
    %9 = arith.subf %3, %8 : vector<8x32xf32>
    %10 = arith.mulf %9, %9 : vector<8x32xf32>
    %cst_5 = arith.constant dense<0.000000e+00> : vector<32xf32>
    %11 = vector.multi_reduction <add>, %10, %cst_5 [0] : vector<8x32xf32> to vector<32xf32>
    %12 = vector.shape_cast %11 : vector<32xf32> to vector<1x32xf32>
    %cst_6 = arith.constant 8.000000e+00 : f32
    %13 = vector.broadcast %cst_6 : f32 to vector<1x32xf32>
    %14 = arith.divf %12, %13 : vector<1x32xf32>
    %c0_7 = arith.constant 0 : index
    %c0_8 = arith.constant 0 : index
    %15 = vector.load %arg3[%c0_7, %c0_8] : memref<3x64xf32, #tpu.memory_space<vmem>>, vector<1x32xf32>
    %c1 = arith.constant 1 : index
    %c0_9 = arith.constant 0 : index
    %16 = vector.load %arg3[%c1, %c0_9] : memref<3x64xf32, #tpu.memory_space<vmem>>, vector<1x32xf32>
    %c2 = arith.constant 2 : index
    %c0_10 = arith.constant 0 : index
    %17 = vector.load %arg3[%c2, %c0_10] : memref<3x64xf32, #tpu.memory_space<vmem>>, vector<1x64xf32>
    %cst_11 = arith.constant 9.99999974E-6 : f32
    %18 = vector.broadcast %cst_11 : f32 to vector<1x32xf32>
    %19 = arith.addf %14, %18 : vector<1x32xf32>
    %20 = math.rsqrt %19 : vector<1x32xf32>
    %21 = arith.mulf %15, %20 : vector<1x32xf32>
    %22 = arith.mulf %7, %21 : vector<1x32xf32>
    %23 = arith.subf %16, %22 : vector<1x32xf32>
    %24 = vector.broadcast %21 : vector<1x32xf32> to vector<8x32xf32>
    %25 = arith.mulf %3, %24 : vector<8x32xf32>
    %26 = vector.broadcast %23 : vector<1x32xf32> to vector<8x32xf32>
    %27 = arith.addf %25, %26 : vector<8x32xf32>
    %cst_12 = arith.constant 0.000000e+00 : f32
    %28 = vector.broadcast %cst_12 : f32 to vector<8x32xf32>
    %29 = arith.maximumf %27, %28 : vector<8x32xf32>
    %30 = arith.truncf %29 : vector<8x32xf32> to vector<8x32xbf16>
    %c0_13 = arith.constant 0 : index
    %c0_14 = arith.constant 0 : index
    %31 = vector.load %arg2[%c0_13, %c0_14] : memref<32x64xbf16, #tpu.memory_space<vmem>>, vector<32x64xbf16>
    %cst_15 = arith.constant dense<0.000000e+00> : vector<8x64xf32>
    %32 = tpu.matmul %30, %31, %cst_15 {dimension_numbers = #tpu.dot_dimension_numbers<[1], [0], [0], [1], [0, 0, 1, 1], [], []>} : vector<8x32xbf16>, vector<32x64xbf16>, vector<8x64xf32> -> vector<8x64xf32>
    %33 = vector.broadcast %17 : vector<1x64xf32> to vector<8x64xf32>
    %34 = arith.addf %32, %33 : vector<8x64xf32>
    %35 = arith.negf %34 : vector<8x64xf32>
    %36 = math.exp %35 : vector<8x64xf32>
    %cst_16 = arith.constant 1.000000e+00 : f32
    %37 = vector.broadcast %cst_16 : f32 to vector<8x64xf32>
    %38 = arith.addf %37, %36 : vector<8x64xf32>
    %39 = arith.divf %37, %38 : vector<8x64xf32>
    %c0_17 = arith.constant 0 : index
    %c0_18 = arith.constant 0 : index
    %40 = vector.load %arg4[%c0_17, %c0_18] : memref<8x64xf32, #tpu.memory_space<vmem>>, vector<8x64xf32>
    tpu.vector_store %arg4[%c0_17, %c0_18], %39 {strides = array<i32>} : memref<8x64xf32, #tpu.memory_space<vmem>>, vector<8x64xf32>,
    return
  }
}

</mosaic_0001>

<llo_original>
// kernel: decoder_forward.1
$region0: #{decoder_forward.1}
  #allocation0 [shape = 'u32[]', space=smem, size = 0x4, offset = 0x4, fixed_abs, tag = 'smem constant byte address 0x4 - core index']
  #allocation1 [shape = 'u32[144,128]{1,0:T(1,128)}', space=vmem, size = 0x12000, scoped, tag = 'internal scratch']
  %s0 = inlined_call_operand.vmem [shape: f32[8,32], index: 0, kind: input, shape index: {}]
  %s1 = inlined_call_operand.vmem [shape: bf16[32,32], index: 1, kind: input, shape index: {}]
  %s2 = inlined_call_operand.hbm [shape: bf16[32,64], index: 2, kind: input, shape index: {}]
  %s3 = inlined_call_operand.vmem [shape: f32[3,64], index: 3, kind: input, shape index: {}]
  %s4 = inlined_call_operand.vmem [shape: f32[8,64], index: 4, kind: output, shape index: {}]
  %s5 = sld [smem:[#allocation0]]
  $region30: #{decoder_forward.1} parent=0
    _
  %s7 = ssub.s32 1, %s5
  %s8 = scalar_select 0, %s7, %s5
  $region1: #{decoder_forward.1} parent=0
    #allocation2 [shape = 'u8[8192]{0}', space=vmem, size = 0x2000, scoped, tag = 'input window, operand 2, single buffered']
    #allocation3 [shape = 's32[1]{0}', space=sflag, size = 0x4, scoped, tag = 'scoped memory for decoder_forward.1']
    %9 = vsyncpa [#allocation3], 0
    // Predicated region
    $region2: #{decoder_forward.1} parent=1 // pred_check
      _
    $region3: #{decoder_forward.1} parent=1 // pred_check_branch
      %11 = sbr.rel (0) target = $region5
    $region4: #{decoder_forward.1} parent=1 // pred_region
      _
    $region5: #{decoder_forward.1} parent=1 // pred_fallthru
      _
    // Predicated region
    $region6: #{decoder_forward.1} parent=1 // pred_check
      _
    $region7: #{decoder_forward.1} parent=1 // pred_check_branch
      %13 = sbr.rel (0) target = $region9
    $region8: #{decoder_forward.1} parent=1 // pred_region
      _
    $region9: #{decoder_forward.1} parent=1 // pred_fallthru
      _
    // Predicated region
    $region10: #{decoder_forward.1} parent=1 // pred_check
      _
    $region11: #{decoder_forward.1} parent=1 // pred_check_branch
      %15 = sbr.rel (0) target = $region13
    $region12: #{decoder_forward.1} parent=1 // pred_region
      %s17 = ssub.s32 256, 256
      %18 = vsyncadd [#allocation3], %s17
      %s19 = sshll.u32 [#allocation2], 4
      %s20 = int_to_ptr.vmem [resolvable:$true] %s19
      %25 = dma.hbm_to_vmem [thread:$0]  %s2, 256, %s20, [#allocation3], 64, 64, 4
    $region13: #{decoder_forward.1} parent=1 // pred_fallthru
      _
    // Predicated region
    $region14: #{decoder_forward.1} parent=1 // pred_check
      _
    $region15: #{decoder_forward.1} parent=1 // pred_check_branch
      %27 = sbr.rel (0) target = $region17
    $region16: #{decoder_forward.1} parent=1 // pred_region
      _
    $region17: #{decoder_forward.1} parent=1 // pred_fallthru
      _
    // Predicated region
    $region18: #{decoder_forward.1} parent=1 // pred_check
      _
    $region19: #{decoder_forward.1} parent=1 // pred_check_branch
      %29 = sbr.rel (0) target = $region21
    $region20: #{decoder_forward.1} parent=1 // pred_region
      %30 = dma.done [#allocation3], 256
    $region21: #{decoder_forward.1} parent=1 // pred_fallthru
      _
    %v32 = vld [vmem:[%s0] sm:$0xff]
    %v33 = vpack.c.bf16 %v32, %v32
    %v34 = vld [vmem:[%s1] sm:$0xf]
    %v35 = vld [vmem:[%s1 + $0x4] sm:$0xf]
    %v36 = vld [vmem:[%s1 + $0x8] sm:$0xf]
    %v37 = vld [vmem:[%s1 + $0xc] sm:$0xf]
    %v42 = vunpack.c.l.b16 %v34
    %v43 = vunpack.c.l.b16 %v35
    %v44 = vunpack.c.l.b16 %v36
    %v45 = vunpack.c.l.b16 %v37
    %v46 = vpack.c.b16 %v43, %v42
    %v47 = vpack.c.b16 %v45, %v44
    %vm50 = vcmask 261120
    %v52 = vsel %vm50, %v33, 0
    %54 = vmatprep.subr.bf16.mxu0 0
    %55 = vmatpush1.bf16.msra.mxu0 0
    %56 = vmatprep.subr.bf16.mxu0 0
    %57 = vmatpush1.bf16.msra.mxu0 0
    %58 = vmatprep.subr.bf16.mxu0 0
    %59 = vmatpush1.bf16.msra.mxu0 0
    %60 = vmatprep.subr.bf16.mxu0 0
    %61 = vmatpush1.bf16.msra.mxu0 0
    %62 = vmatprep.subr.bf16.mxu0 0
    %63 = vmatpush1.bf16.msra.mxu0 0
    %64 = vmatprep.subr.bf16.mxu0 0
    %65 = vmatpush1.bf16.msra.mxu0 0
    %66 = vmatprep.subr.bf16.mxu0 0
    %67 = vmatpush1.bf16.msra.mxu0 %v47
    %68 = vmatprep.subr.bf16.mxu0 0
    %69 = vmatpush1.bf16.msra.mxu0 %v46
    %70 = vmatprep.subr.bf16.mxu0 0
    %71 = vmatpush2.bf16.msra.mxu0 0
    %72 = vmatprep.subr.bf16.mxu0 0
    %73 = vmatpush2.bf16.msra.mxu0 0
    %74 = vmatprep.subr.bf16.mxu0 0
    %75 = vmatpush2.bf16.msra.mxu0 0
    %76 = vmatprep.subr.bf16.mxu0 0
    %77 = vmatpush2.bf16.msra.mxu0 0
    %78 = vmatprep.subr.bf16.mxu0 0
    %79 = vmatpush2.bf16.msra.mxu0 0
    %80 = vmatprep.subr.bf16.mxu0 0
    %81 = vmatpush2.bf16.msra.mxu0 0
    %82 = vmatprep.subr.bf16.mxu0 0
    %83 = vmatpush2.bf16.msra.mxu0 0
    %84 = vmatprep.subr.bf16.mxu0 0
    %85 = vmatpush2.bf16.msra.mxu0 0
    %86 = vmatprep.mubr.bf16.mxu0 0
    %87 = vmatmul.mubr.bf16.gmra.mxu0 %v52
    %v88 = vpop.f32.mrf.mxu0
    %v89 = vadd.f32 0.0, %v88
    %v90 = vpop.f32.mrf.mxu0
    %v91 = vpop.f32.mrf.mxu0
    %v92 = vpop.f32.mrf.mxu0
    %93 = vdwg.mxu0
    %v94 = vsel %vm50, %v89, 0.0
    %v95 = vrot.slane %v94, 4
    %v96 = vadd.f32 %v94, %v95
    %v97 = vrot.slane %v96, 2
    %v98 = vadd.f32 %v96, %v97
    %v99 = vrot.slane %v98, 1
    %v100 = vadd.f32 %v98, %v99
    %v101 = vrcp.pop 8.0
    %v102 = vmul.f32 %v100, %v101
    %v103 = vsub.f32 %v89, %v102
    %v104 = vmul.f32 %v103, %v103
    %v105 = vsel %vm50, %v104, 0.0
    %v106 = vrot.slane %v105, 4
    %v107 = vadd.f32 %v105, %v106
    %v108 = vrot.slane %v107, 2
    %v109 = vadd.f32 %v107, %v108
    %v110 = vrot.slane %v109, 1
    %v111 = vadd.f32 %v109, %v110
    %v112 = vmul.f32 %v111, %v101
    %v113 = vld [vmem:[%s3] sm:$0x1]
    %v114 = vld [vmem:[%s3 + $0x1] sm:$0x1]
    %v115 = vld [vmem:[%s3 + $0x2] sm:$0x1]
    %v116 = vadd.f32 %v112, 1e-05
    %v117 = vrsqrt.pop %v116
    %v118 = vmul.f32 %v113, %v117
    %v119 = vmul.f32 %v102, %v118
    %v120 = vsub.f32 %v114, %v119
    %v121 = vlaneseq
    %v122 = vshrl.u32 %v121, 7
    %v123 = vsub.s32 0, %v122
    %v124 = vrot.slane %v118, %v123
    %v125 = vmul.f32 %v89, %v124
    %v126 = vlaneseq
    %v127 = vshrl.u32 %v126, 7
    %v128 = vsub.s32 0, %v127
    %v129 = vrot.slane %v120, %v128
    %v130 = vadd.f32 %v125, %v129
    %v131 = vmax.f32 %v130, 0.0
    %v132 = vpack.c.bf16 %v131, %v131
    %v133 = vld [vmem:[#allocation2] sm:$0xf]
    %v134 = vld [vmem:[#allocation2 + $0x4] sm:$0xf]
    %v135 = vld [vmem:[#allocation2 + $0x8] sm:$0xf]
    %v136 = vld [vmem:[#allocation2 + $0xc] sm:$0xf]
    %v137 = vlaneseq
    %v138 = vshrl.u32 %v137, 7
    %v139 = vsub.s32 0, %v138
    %v140 = vrot.slane %v115, %v139
    %v145 = vunpack.c.l.b16 %v133
    %v146 = vunpack.c.l.b16 %v134
    %v147 = vunpack.c.l.b16 %v135
    %v148 = vunpack.c.l.b16 %v136
    %v149 = vpack.c.b16 %v146, %v145
    %v150 = vpack.c.b16 %v148, %v147
    %v154 = vsel %vm50, %v132, 0
    %156 = vmatprep.subr.bf16.mxu0 0
    %157 = vmatpush1.bf16.msra.mxu0 0
    %158 = vmatprep.subr.bf16.mxu0 0
    %159 = vmatpush1.bf16.msra.mxu0 0
    %160 = vmatprep.subr.bf16.mxu0 0
    %161 = vmatpush1.bf16.msra.mxu0 0
    %162 = vmatprep.subr.bf16.mxu0 0
    %163 = vmatpush1.bf16.msra.mxu0 0
    %164 = vmatprep.subr.bf16.mxu0 0
    %165 = vmatpush1.bf16.msra.mxu0 0
    %166 = vmatprep.subr.bf16.mxu0 0
    %167 = vmatpush1.bf16.msra.mxu0 0
    %168 = vmatprep.subr.bf16.mxu0 0
    %169 = vmatpush1.bf16.msra.mxu0 %v150
    %170 = vmatprep.subr.bf16.mxu0 0
    %171 = vmatpush1.bf16.msra.mxu0 %v149
    %172 = vmatprep.subr.bf16.mxu0 0
    %173 = vmatpush2.bf16.msra.mxu0 0
    %174 = vmatprep.subr.bf16.mxu0 0
    %175 = vmatpush2.bf16.msra.mxu0 0
    %176 = vmatprep.subr.bf16.mxu0 0
    %177 = vmatpush2.bf16.msra.mxu0 0
    %178 = vmatprep.subr.bf16.mxu0 0
    %179 = vmatpush2.bf16.msra.mxu0 0
    %180 = vmatprep.subr.bf16.mxu0 0
    %181 = vmatpush2.bf16.msra.mxu0 0
    %182 = vmatprep.subr.bf16.mxu0 0
    %183 = vmatpush2.bf16.msra.mxu0 0
    %184 = vmatprep.subr.bf16.mxu0 0
    %185 = vmatpush2.bf16.msra.mxu0 0
    %186 = vmatprep.subr.bf16.mxu0 0
    %187 = vmatpush2.bf16.msra.mxu0 0
    %188 = vmatprep.mubr.bf16.mxu0 0
    %189 = vmatmul.mubr.bf16.gmra.mxu0 %v154
    %v190 = vpop.f32.mrf.mxu0
    %v191 = vadd.f32 %v140, %v190
    %v192 = vpop.f32.mrf.mxu0
    %v193 = vpop.f32.mrf.mxu0
    %v194 = vpop.f32.mrf.mxu0
    %195 = vdwg.mxu0
    %v196 = vxor.u32 %v191, 2147483648
    %v197 = vmul.f32 %v196, 1.442695
    %v198 = vpow.pop %v197
    %v199 = vadd.f32 %v198, 1.0
    %v200 = vrcp.pop %v199
    %v201 = vmul.f32 1.0, %v200
    %vm202 = vcmask 523264
    %203 = vst.msk [vmem:[%s4] sm:$0xff] %vm202, %v201
    // Predicated region
    $region22: #{decoder_forward.1} parent=1 // pred_check
      _
    $region23: #{decoder_forward.1} parent=1 // pred_check_branch
      %205 = sbr.rel (0) target = $region25
    $region24: #{decoder_forward.1} parent=1 // pred_region
      _
    $region25: #{decoder_forward.1} parent=1 // pred_fallthru
      _
    // Predicated region
    $region26: #{decoder_forward.1} parent=1 // pred_check
      _
    $region27: #{decoder_forward.1} parent=1 // pred_check_branch
      %207 = sbr.rel (0) target = $region29
    $region28: #{decoder_forward.1} parent=1 // pred_region
      _
    $region29: #{decoder_forward.1} parent=1 // pred_fallthru
      _
    %208 = vsyncpa [#allocation3], 1

</llo_original>
